<compile_context>
chip_gen: v5e
topology: v5e:2x2
jax: 0.10.0
libtpu: 0.0.40
codegen_flags: <defaults>
</compile_context>

<pallas_src>
from math import sqrt

import numpy as np
import jax
import jax.numpy as jnp
from jax.experimental import pallas as pl
from jax.experimental.pallas import tpu as pltpu

_MIB = 1024 * 1024


def _round_up(x, m):
    return ((x + m - 1) // m) * m


# ------------------------------ kernels ------------------------------------ #

def _modulated_linear_kernel(m_ref, x_ref, wl_ref, bl_ref, wm_ref, o_ref):
    # x_ref : (TM, in_dim)   wl_ref : (in_dim, TN)
    # m_ref : (TM, mod_dim)  wm_ref : (mod_dim, TN)
    # bl_ref: (1, TN)        o_ref  : (TM, TN)
    acc = jnp.dot(x_ref[...], wl_ref[...], preferred_element_type=jnp.float32)
    # On v7x the MRB accumulates the second MXU push in place; on v5e/v6e this is a
    # single extra VPU add on an HBM-bound kernel, so keep the simple two-dot form.
    acc = acc + jnp.dot(m_ref[...], wm_ref[...], preferred_element_type=jnp.float32)
    o_ref[...] = (acc + bl_ref[...].astype(jnp.float32)).astype(o_ref.dtype)


def _linear_kernel(x_ref, wl_ref, bl_ref, o_ref):
    # modulation_dim == 0 path (self.modulation is None in the PyTorch module).
    acc = jnp.dot(x_ref[...], wl_ref[...], preferred_element_type=jnp.float32)
    o_ref[...] = (acc + bl_ref[...].astype(jnp.float32)).astype(o_ref.dtype)


# ---------------------------- parameter prep -------------------------------- #

def prepare_params(w_linear, b_linear, w_mod=None, param_dtype=None,
                   pad_out_to_lanes=False):
    """Hoist PyTorch-layout transposes (and optional dtype cast / lane padding) out
    of the per-call path.  Run once at init.

    w_linear: (out_dim, in_dim), b_linear: (out_dim,), w_mod: (out_dim, mod_dim)|None
    param_dtype: store weights/bias in this dtype; match the activation dtype
        (e.g. jnp.bfloat16) to halve weight HBM traffic and keep the MXU on the fast
        homogeneous-dtype path (accumulation stays f32 inside the kernel).
    pad_out_to_lanes: pad out_dim up to a multiple of 128 so output stores are
        lane-dense; pass the original out_dim as `out_features=` to the wrapper.

    Returns wl_t (in_dim, out_w), bl (1, out_w), wm_t (mod_dim, out_w) | None.
    """
    if param_dtype is None:
        param_dtype = jnp.asarray(w_linear).dtype
    wl_t = jnp.asarray(w_linear, param_dtype).T
    bl = jnp.asarray(b_linear, param_dtype).reshape(1, -1)
    wm_t = None if w_mod is None else jnp.asarray(w_mod, param_dtype).T

    if pad_out_to_lanes:
        out_dim = wl_t.shape[1]
        out_pad = _round_up(out_dim, 128)
        if out_pad != out_dim:
            pad = out_pad - out_dim
            wl_t = jnp.pad(wl_t, ((0, 0), (0, pad)))
            bl = jnp.pad(bl, ((0, 0), (0, pad)))
            if wm_t is not None:
                wm_t = jnp.pad(wm_t, ((0, 0), (0, pad)))
    return wl_t, bl, wm_t


# -------------------------- generation-aware limits -------------------------- #

def _vmem_capacity_bytes():
    try:
        return int(pltpu.get_tpu_info().vmem_capacity_bytes)
    except Exception:
        return 64 * _MIB                      # conservative (v7x-sized) fallback


def _default_vmem_limit(capacity):
    if capacity >= 96 * _MIB:                 # v5e / v6e: 128 MiB physical
        return 100 * _MIB
    return max(32 * _MIB, capacity - 8 * _MIB)   # v7x: 64 MiB -> ~56 MiB


# ------------------------------ tiling logic -------------------------------- #

def _choose_tile_cols(out_width, k_dim, w_bytes, budget_bytes):
    """Largest lane-multiple column tile whose double-buffered resident weights
    (Wl^T and Wm^T with combined K=k_dim, plus bias) leave >= half the budget for the
    streamed row tiles and the f32 accumulator."""
    def resident(tn):
        return 2 * (k_dim * tn + tn) * w_bytes
    if out_width <= 128 or resident(out_width) <= budget_bytes // 2:
        return out_width
    for cand in (2048, 1024, 512, 256, 128):
        if cand <= out_width and resident(cand) <= budget_bytes // 2:
            return cand
    return 128


def _choose_tile_rows(rows, requested, per_step_bytes_fn, budget_bytes, min_steps=4):
    tm = max(8, min(_round_up(requested, 8), _round_up(rows, 8)))
    # Target >= min_steps row steps (>= 2 per TC on v7x megacore) so each core's
    # double-buffered pipeline actually overlaps DMA with compute.
    if rows > min_steps * 8 and pl.cdiv(rows, tm) < min_steps:
        tm = max(8, _round_up(pl.cdiv(rows, min_steps), 8))
    # Clip against the VMEM budget (streamed tiles + resident weights + f32 acc).
    while tm > 8 and per_step_bytes_fn(tm) > budget_bytes:
        tm = max(8, _round_up(tm // 2, 8))
    return tm


# ------------------------------ public wrapper ------------------------------ #

def modulated_linear(modulations, x, wl_t, bl, wm_t, *, tile_rows=None,
                     out_dtype=None, out_features=None, vmem_limit_bytes=None):
    """
    modulations: (..., mod_dim) or None
    x:           (..., in_dim)
    wl_t, bl, wm_t: prepared params from prepare_params()
    out_features: slice a lane-padded output width back to this size (optional)
    returns:     (..., out_features or wl_t.shape[1]) in out_dtype (default x.dtype)
    """
    lead = x.shape[:-1]
    in_dim = x.shape[-1]
    out_width = wl_t.shape[1]
    out_dtype = x.dtype if out_dtype is None else out_dtype

    x2 = x.reshape(-1, in_dim)
    rows = x2.shape[0]

    has_mod = (wm_t is not None) and (modulations is not None)
    if has_mod:
        mod_dim = wm_t.shape[0]
        m2 = modulations.reshape(-1, mod_dim)
    else:
        mod_dim = 0
        m2 = None

    # Keep the MXU on the fast homogeneous-dtype path.  Prefer matching dtypes at
    # prepare_params(param_dtype=...) time; this per-call cast is only the fallback.
    if wl_t.dtype != x2.dtype:
        wl_t = wl_t.astype(x2.dtype)
    if has_mod and wm_t.dtype != x2.dtype:
        wm_t = wm_t.astype(x2.dtype)

    capacity = _vmem_capacity_bytes()
    if vmem_limit_bytes is None:
        vmem_limit_bytes = _default_vmem_limit(capacity)
    if tile_rows is None:
        tile_rows = 512 if capacity <= 64 * _MIB else 1024   # v7x keeps headroom

    w_bytes = wl_t.dtype.itemsize
    act_bytes = x2.dtype.itemsize
    mod_bytes = m2.dtype.itemsize if has_mod else 0
    out_bytes = np.dtype(out_dtype).itemsize

    budget = (vmem_limit_bytes * 4) // 5
    tn = _choose_tile_cols(out_width, in_dim + mod_dim, w_bytes, budget)

    def per_step_bytes(tm):
        streamed = 2 * tm * (in_dim * act_bytes + mod_dim * mod_bytes + tn * out_bytes)
        resident = 2 * ((in_dim + mod_dim) * tn + tn) * w_bytes
        acc_tmps = 2 * tm * tn * 4            # compiler-materialized f32 dot results
        return streamed + resident + acc_tmps

    tm = _choose_tile_rows(rows, tile_rows, per_step_bytes, budget)

    n_row_tiles = pl.cdiv(rows, tm)           # ragged rows: boundary block is masked
    n_col_tiles = pl.cdiv(out_width, tn)

    # Pick grid order by HBM traffic: rows-outer re-streams the weights once per row
    # tile; cols-outer re-streams the activations once per column tile.
    x_stream_bytes = rows * (in_dim * act_bytes + mod_dim * mod_bytes)
    w_stream_bytes = ((in_dim + mod_dim) * out_width + out_width) * w_bytes
    out_traffic = rows * out_width * out_bytes
    if n_col_tiles <= 1 or n_row_tiles <= 1:
        rows_outer = True
        w_traffic, x_traffic = w_stream_bytes, x_stream_bytes
    else:
        rows_outer = (n_row_tiles * w_stream_bytes + x_stream_bytes
                      <= n_col_tiles * x_stream_bytes + w_stream_bytes)
        if rows_outer:
            w_traffic, x_traffic = n_row_tiles * w_stream_bytes, x_stream_bytes
        else:
            w_traffic, x_traffic = w_stream_bytes, n_col_tiles * x_stream_bytes

    if rows_outer:
        grid = (n_row_tiles, n_col_tiles)
        ri = lambda a, b: a
        ci = lambda a, b: b
    else:
        grid = (n_col_tiles, n_row_tiles)
        ri = lambda a, b: b
        ci = lambda a, b: a

    if has_mod:
        kernel = _modulated_linear_kernel
        in_specs = [
            pl.BlockSpec((tm, mod_dim), lambda a, b: (ri(a, b), 0)),   # modulations
            pl.BlockSpec((tm, in_dim), lambda a, b: (ri(a, b), 0)),    # x
            pl.BlockSpec((in_dim, tn), lambda a, b: (0, ci(a, b))),    # Wl^T
            pl.BlockSpec((1, tn), lambda a, b: (0, ci(a, b))),         # bias
            pl.BlockSpec((mod_dim, tn), lambda a, b: (0, ci(a, b))),   # Wm^T
        ]
        operands = (m2, x2, wl_t, bl, wm_t)
    else:
        kernel = _linear_kernel
        in_specs = [
            pl.BlockSpec((tm, in_dim), lambda a, b: (ri(a, b), 0)),    # x
            pl.BlockSpec((in_dim, tn), lambda a, b: (0, ci(a, b))),    # Wl^T
            pl.BlockSpec((1, tn), lambda a, b: (0, ci(a, b))),         # bias
        ]
        operands = (x2, wl_t, bl)

    flops = 2 * rows * (in_dim + mod_dim) * out_width + rows * out_width
    bytes_accessed = x_traffic + w_traffic + out_traffic

    out = pl.pallas_call(
        kernel,
        out_shape=jax.ShapeDtypeStruct((rows, out_width), out_dtype),
        grid_spec=pltpu.PrefetchScalarGridSpec(
            num_scalar_prefetch=0,
            grid=grid,
            in_specs=in_specs,
            out_specs=pl.BlockSpec((tm, tn), lambda a, b: (ri(a, b), ci(a, b))),
        ),
        compiler_params=pltpu.CompilerParams(
            dimension_semantics=("parallel", "parallel"),
            vmem_limit_bytes=vmem_limit_bytes,
        ),
        cost_estimate=pl.CostEstimate(
            flops=int(flops), transcendentals=0, bytes_accessed=int(bytes_accessed)),
    )(*operands)

    if out_features is not None and out_features < out_width:
        out = out[:, :out_features]
        out_width = out_features
    return out.reshape(*lead, out_width)


# ------------------------------ reference & test ---------------------------- #

def reference(modulations, x, w_linear, b_linear, w_mod):
    out = x @ w_linear.T + b_linear
    if (w_mod is not None) and (modulations is not None):
        out = out + modulations @ w_mod.T
    return out


if __name__ == "__main__":
    key = jax.random.PRNGKey(0)

    batch, n_pts = 2, 64
    in_dim, out_dim, mod_dim = 32, 128, 16

    k_x, k_m, k_wl, k_bl, k_wm = jax.random.split(key, 5)
    x = jax.random.normal(k_x, (batch, n_pts, in_dim), dtype=jnp.float32)
    mods = jax.random.normal(k_m, (batch, n_pts, mod_dim), dtype=jnp.float32)

    # nn.Linear default init: U(-1/sqrt(fan_in), 1/sqrt(fan_in)).
    bound_l = 1.0 / sqrt(in_dim)
    w_linear = jax.random.uniform(k_wl, (out_dim, in_dim), jnp.float32, -bound_l, bound_l)
    b_linear = jax.random.uniform(k_bl, (out_dim,), jnp.float32, -bound_l, bound_l)
    bound_m = 1.0 / sqrt(mod_dim)
    w_mod = jax.random.uniform(k_wm, (out_dim, mod_dim), jnp.float32, -bound_m, bound_m)

    # Hoisted once at init (no per-call transpose pass over HBM).
    wl_t, bl, wm_t = prepare_params(w_linear, b_linear, w_mod)

    run = jax.jit(modulated_linear)

    # 1) f32 activations, clean row count.
    out_f32 = jax.block_until_ready(run(mods, x, wl_t, bl, wm_t))
    ref_f32 = reference(mods, x, w_linear, b_linear, w_mod)
    assert out_f32.shape == (batch, n_pts, out_dim)
    assert jnp.allclose(out_f32, ref_f32, atol=1e-4, rtol=1e-4), "f32 mismatch vs reference"

    # 2) bf16 streamed activations + matched bf16 weights (fast MXU path), ragged rows
    #    (exercises the no-pad boundary-masked path).
    wl_t16, bl16, wm_t16 = prepare_params(w_linear, b_linear, w_mod,
                                          param_dtype=jnp.bfloat16)
    x_r = x[:, :50].astype(jnp.bfloat16)
    m_r = mods[:, :50].astype(jnp.bfloat16)
    out_bf16 = jax.block_until_ready(run(m_r, x_r, wl_t16, bl16, wm_t16))
    ref_bf16 = reference(m_r.astype(jnp.float32), x_r.astype(jnp.float32),
                         wl_t16.T.astype(jnp.float32), bl16[0].astype(jnp.float32),
                         wm_t16.T.astype(jnp.float32))
    assert out_bf16.dtype == jnp.bfloat16
    assert out_bf16.shape == (batch, 50, out_dim)
    assert jnp.allclose(out_bf16.astype(jnp.float32), ref_bf16, atol=5e-2, rtol=5e-2), \
        "bf16 mismatch vs reference"

    # 3) modulation_dim == 0 path (self.modulation is None).
    out_nomod = jax.block_until_ready(run(None, x, wl_t, bl, None))
    ref_nomod = reference(None, x, w_linear, b_linear, None)
    assert jnp.allclose(out_nomod, ref_nomod, atol=1e-4, rtol=1e-4), "no-mod mismatch"

    # 4) out_dim not a multiple of 128: lane-pad weights at init, slice once at the end.
    out_dim2 = 96
    w_l2 = w_linear[:out_dim2]
    b_l2 = b_linear[:out_dim2]
    w_m2 = w_mod[:out_dim2]
    wl_t2, bl2, wm_t2 = prepare_params(w_l2, b_l2, w_m2, pad_out_to_lanes=True)
    run_pad = jax.jit(lambda m, xx, wl, b, wm:
                      modulated_linear(m, xx, wl, b, wm, out_features=out_dim2))
    out_pad = jax.block_until_ready(run_pad(mods, x, wl_t2, bl2, wm_t2))
    ref_pad = reference(mods, x, w_l2, b_l2, w_m2)
    assert out_pad.shape == (batch, n_pts, out_dim2)
    assert jnp.allclose(out_pad, ref_pad, atol=1e-4, rtol=1e-4), "lane-pad mismatch"

    print("KERNEL_OK")
</pallas_src>

<mosaic_0001>
module attributes {stable_mosaic.version = 11 : i64} {
  func.func @_modulated_linear_kernel(%arg0: i32, %arg1: i32, %arg2: memref<32x16xf32, #tpu.memory_space<vmem>>, %arg3: memref<32x32xf32, #tpu.memory_space<vmem>>, %arg4: memref<32x128xf32, #tpu.memory_space<vmem>>, %arg5: memref<1x128xf32, #tpu.memory_space<vmem>>, %arg6: memref<16x128xf32, #tpu.memory_space<vmem>>, %arg7: memref<32x128xf32, #tpu.memory_space<vmem>>) attributes {dimension_semantics = [#tpu.dimension_semantics<parallel>, #tpu.dimension_semantics<parallel>], iteration_bounds = array<i64: 4, 1>, scalar_prefetch = 0 : i64, scratch_operands = 0 : i64, tpu.core_type = #tpu.core_type<tc>, window_params = [{transform_indices = @transform_0, window_bounds = array<i64: 32, 16>}, {transform_indices = @transform_1, window_bounds = array<i64: 32, 32>}, {transform_indices = @transform_2, window_bounds = array<i64: 32, 128>}, {transform_indices = @transform_3, window_bounds = array<i64: 1, 128>}, {transform_indices = @transform_4, window_bounds = array<i64: 16, 128>}, {transform_indices = @transform_5, window_bounds = array<i64: 32, 128>}]} {
    %c0 = arith.constant 0 : index
    %c0_0 = arith.constant 0 : index
    %0 = vector.load %arg3[%c0, %c0_0] : memref<32x32xf32, #tpu.memory_space<vmem>>, vector<32x32xf32>
    %c0_1 = arith.constant 0 : index
    %c0_2 = arith.constant 0 : index
    %1 = vector.load %arg4[%c0_1, %c0_2] : memref<32x128xf32, #tpu.memory_space<vmem>>, vector<32x128xf32>
    %cst = arith.constant dense<0.000000e+00> : vector<32x128xf32>
    %2 = tpu.matmul %0, %1, %cst {dimension_numbers = #tpu.dot_dimension_numbers<[1], [0], [0], [1], [0, 0, 1, 1], [], []>} : vector<32x32xf32>, vector<32x128xf32>, vector<32x128xf32> -> vector<32x128xf32>
    %c0_3 = arith.constant 0 : index
    %c0_4 = arith.constant 0 : index
    %3 = vector.load %arg2[%c0_3, %c0_4] : memref<32x16xf32, #tpu.memory_space<vmem>>, vector<32x16xf32>
    %c0_5 = arith.constant 0 : index
    %c0_6 = arith.constant 0 : index
    %4 = vector.load %arg6[%c0_5, %c0_6] : memref<16x128xf32, #tpu.memory_space<vmem>>, vector<16x128xf32>
    %cst_7 = arith.constant dense<0.000000e+00> : vector<32x128xf32>
    %5 = tpu.matmul %3, %4, %cst_7 {dimension_numbers = #tpu.dot_dimension_numbers<[1], [0], [0], [1], [0, 0, 1, 1], [], []>} : vector<32x16xf32>, vector<16x128xf32>, vector<32x128xf32> -> vector<32x128xf32>
    %6 = arith.addf %2, %5 : vector<32x128xf32>
    %c0_8 = arith.constant 0 : index
    %c0_9 = arith.constant 0 : index
    %7 = vector.load %arg5[%c0_8, %c0_9] : memref<1x128xf32, #tpu.memory_space<vmem>>, vector<1x128xf32>
    %8 = vector.broadcast %7 : vector<1x128xf32> to vector<32x128xf32>
    %9 = arith.addf %6, %8 : vector<32x128xf32>
    %c0_10 = arith.constant 0 : index
    %c0_11 = arith.constant 0 : index
    %10 = vector.load %arg7[%c0_10, %c0_11] : memref<32x128xf32, #tpu.memory_space<vmem>>, vector<32x128xf32>
    tpu.vector_store %arg7[%c0_10, %c0_11], %9 {strides = array<i32>} : memref<32x128xf32, #tpu.memory_space<vmem>>, vector<32x128xf32>,
    return
  }
  func.func @transform_0(%arg0: i32, %arg1: i32) -> (i32, i32) {
    %c0_i32 = arith.constant 0 : i32
    %c0_i32_0 = arith.constant 0 : i32
    return %arg0, %c0_i32 : i32, i32
  }
  func.func @transform_1(%arg0: i32, %arg1: i32) -> (i32, i32) {
    %c0_i32 = arith.constant 0 : i32
    %c0_i32_0 = arith.constant 0 : i32
    return %arg0, %c0_i32 : i32, i32
  }
  func.func @transform_2(%arg0: i32, %arg1: i32) -> (i32, i32) {
    %c0_i32 = arith.constant 0 : i32
    %c0_i32_0 = arith.constant 0 : i32
    return %c0_i32, %arg1 : i32, i32
  }
  func.func @transform_3(%arg0: i32, %arg1: i32) -> (i32, i32) {
    %c0_i32 = arith.constant 0 : i32
    %c0_i32_0 = arith.constant 0 : i32
    return %c0_i32, %arg1 : i32, i32
  }
  func.func @transform_4(%arg0: i32, %arg1: i32) -> (i32, i32) {
    %c0_i32 = arith.constant 0 : i32
    %c0_i32_0 = arith.constant 0 : i32
    return %c0_i32, %arg1 : i32, i32
  }
  func.func @transform_5(%arg0: i32, %arg1: i32) -> (i32, i32) {
    %c0_i32 = arith.constant 0 : i32
    return %arg0, %arg1 : i32, i32
  }
}

</mosaic_0001>

<llo_original>
// kernel: modulated_linear.1
$region0: #{modulated_linear.1}
  #allocation0 [shape = 'u32[]', space=smem, size = 0x4, offset = 0x4, fixed_abs, tag = 'smem constant byte address 0x4 - core index']
  #allocation1 [shape = 'u32[72,128]{1,0:T(1,128)}', space=vmem, size = 0x9000, scoped, tag = 'internal scratch']
  %s0 = inlined_call_operand.vmem [shape: f32[128,16], index: 0, kind: input, shape index: {}]
  %s1 = inlined_call_operand.vmem [shape: f32[128,32], index: 1, kind: input, shape index: {}]
  %s2 = inlined_call_operand.vmem [shape: f32[32,128], index: 2, kind: input, shape index: {}]
  %s3 = inlined_call_operand.vmem [shape: f32[1,128], index: 3, kind: input, shape index: {}]
  %s4 = inlined_call_operand.vmem [shape: f32[16,128], index: 4, kind: input, shape index: {}]
  %s5 = inlined_call_operand.hbm [shape: f32[128,128], index: 5, kind: output, shape index: {}]
  %s6 = sld [smem:[#allocation0]]
  $region53: #{modulated_linear.1} parent=0
    _
  %s8 = ssub.s32 1, %s6
  %s9 = scalar_select 0, %s8, %s6
  $region1: #{modulated_linear.1} parent=0
    #allocation2 [shape = 'u8[32768]{0}', space=vmem, size = 0x8000, scoped, tag = 'output window, operand 0']
    #allocation3 [shape = 's32[2]{0}', space=sflag, size = 0x8, scoped, tag = 'scoped memory for modulated_linear.1']
    %10 = vsyncpa [#allocation3], 0
    %s11 = scalar_lea.sflag [#allocation3], 1
    %12 = vsyncpa %s11, 0
    loop: start=0, step=1, limit=6
    $region2: #{modulated_linear.1} parent=1 // loop_pre_header
      _
    $region3: #{modulated_linear.1} parent=1 // loop_header
      %s14 = sphi 0, %s18
      %p15 = scmp.ge.s32.totalorder %s14, 6
      %s21 = sphi 0, %s33
      %s22 = sphi 0, %s29
      %s23 = sphi 0, %s21
      %s24 = sphi 0, %s22
      %s25 = sphi 0, %s23
      %s26 = sphi 0, %s24
      %s36 = sphi 0, %s38
      %s39 = sphi 0, %s36
      %s40 = sphi 0, %s39
      %s56 = sphi 0, %s40
      %s62 = sphi 0, %s64
      %s65 = sphi 0, %s62
      %s66 = sphi 0, %s65
      %s82 = sphi 0, %s66
      %s88 = sphi 0, %s90
      %s91 = sphi 0, %s88
      %s92 = sphi 0, %s91
      %s108 = sphi 0, %s92
      %s114 = sphi 0, %s116
      %s117 = sphi 0, %s114
      %s118 = sphi 0, %s117
      %s134 = sphi 0, %s118
      %s140 = sphi 0, %s142
      %s143 = sphi 0, %s140
      %s144 = sphi 0, %s143
      %s160 = sphi 0, %s144
      %s168 = sphi 0, %s170
      %s171 = sphi 0, %s168
      %s172 = sphi 0, %s171
      %s188 = sphi 0, %s172
    $region4: #{modulated_linear.1} parent=1 // loop_header_branch
      %17 = sbr.rel (%p15) target = $region8
    $region5: #{modulated_linear.1} parent=1 // loop_body
      %s19 = ssub.s32 %s14, 1
      %s20 = ssub.s32 %s14, 2
      %s27 = sadd.s32 1, %s22
      %p28 = scmp.ge.s32.totalorder %s27, 1
      %s29 = scalar_select %p28, 0, %s27
      %s30 = sadd.s32 1, %s21
      %s31 = scalar_select %p28, %s30, %s21
      %p32 = scmp.ge.s32.totalorder %s31, 4
      %s33 = scalar_select %p32, 0, %s31
      %s34 = ssub.s32 %s21, %s33
      %p35 = scmp.eq.s32.totalorder %s34, 0
      %s37 = sadd.s32 %s36, 1
      %s38 = scalar_select %p35, %s36, %s37
      %p41 = pneg %p35
      %p42 = scmp.eq.s32.totalorder %s14, 3
      %p43 = por %p41, %p42
      %p44 = scmp.ne.s32.totalorder %s36, %s39
      %p45 = scmp.eq.s32.totalorder %s14, 0
      %p46 = por %p44, %p45
      %p47 = scmp.ne.s32.totalorder %s36, %s39
      %p48 = scmp.eq.s32.totalorder %s19, 3
      %p49 = por %p47, %p48
      %p50 = scmp.ne.s32.totalorder %s39, %s40
      %p51 = scmp.eq.s32.totalorder %s19, 0
      %p52 = por %p50, %p51
      %p53 = scmp.ne.s32.totalorder %s39, %s40
      %p54 = scmp.eq.s32.totalorder %s20, 3
      %p55 = por %p53, %p54
      %p57 = scmp.ne.s32.totalorder %s40, %s56
      %p58 = scmp.eq.s32.totalorder %s20, 0
      %p59 = por %p57, %p58
      %s60 = ssub.s32 %s21, %s33
      %p61 = scmp.eq.s32.totalorder %s60, 0
      %s63 = sadd.s32 %s62, 1
      %s64 = scalar_select %p61, %s62, %s63
      %p67 = pneg %p61
      %p68 = scmp.eq.s32.totalorder %s14, 3
      %p69 = por %p67, %p68
      %p70 = scmp.ne.s32.totalorder %s62, %s65
      %p71 = scmp.eq.s32.totalorder %s14, 0
      %p72 = por %p70, %p71
      %p73 = scmp.ne.s32.totalorder %s62, %s65
      %p74 = scmp.eq.s32.totalorder %s19, 3
      %p75 = por %p73, %p74
      %p76 = scmp.ne.s32.totalorder %s65, %s66
      %p77 = scmp.eq.s32.totalorder %s19, 0
      %p78 = por %p76, %p77
      %p79 = scmp.ne.s32.totalorder %s65, %s66
      %p80 = scmp.eq.s32.totalorder %s20, 3
      %p81 = por %p79, %p80
      %p83 = scmp.ne.s32.totalorder %s66, %s82
      %p84 = scmp.eq.s32.totalorder %s20, 0
      %p85 = por %p83, %p84
      %s86 = ssub.s32 %s22, %s29
      %p87 = scmp.eq.s32.totalorder %s86, 0
      %s89 = sadd.s32 %s88, 1
      %s90 = scalar_select %p87, %s88, %s89
      %p93 = pneg %p87
      %p94 = scmp.eq.s32.totalorder %s14, 3
      %p95 = por %p93, %p94
      %p96 = scmp.ne.s32.totalorder %s88, %s91
      %p97 = scmp.eq.s32.totalorder %s14, 0
      %p98 = por %p96, %p97
      %p99 = scmp.ne.s32.totalorder %s88, %s91
      %p100 = scmp.eq.s32.totalorder %s19, 3
      %p101 = por %p99, %p100
      %p102 = scmp.ne.s32.totalorder %s91, %s92
      %p103 = scmp.eq.s32.totalorder %s19, 0
      %p104 = por %p102, %p103
      %p105 = scmp.ne.s32.totalorder %s91, %s92
      %p106 = scmp.eq.s32.totalorder %s20, 3
      %p107 = por %p105, %p106
      %p109 = scmp.ne.s32.totalorder %s92, %s108
      %p110 = scmp.eq.s32.totalorder %s20, 0
      %p111 = por %p109, %p110
      %s112 = ssub.s32 %s22, %s29
      %p113 = scmp.eq.s32.totalorder %s112, 0
      %s115 = sadd.s32 %s114, 1
      %s116 = scalar_select %p113, %s114, %s115
      %p119 = pneg %p113
      %p120 = scmp.eq.s32.totalorder %s14, 3
      %p121 = por %p119, %p120
      %p122 = scmp.ne.s32.totalorder %s114, %s117
      %p123 = scmp.eq.s32.totalorder %s14, 0
      %p124 = por %p122, %p123
      %p125 = scmp.ne.s32.totalorder %s114, %s117
      %p126 = scmp.eq.s32.totalorder %s19, 3
      %p127 = por %p125, %p126
      %p128 = scmp.ne.s32.totalorder %s117, %s118
      %p129 = scmp.eq.s32.totalorder %s19, 0
      %p130 = por %p128, %p129
      %p131 = scmp.ne.s32.totalorder %s117, %s118
      %p132 = scmp.eq.s32.totalorder %s20, 3
      %p133 = por %p131, %p132
      %p135 = scmp.ne.s32.totalorder %s118, %s134
      %p136 = scmp.eq.s32.totalorder %s20, 0
      %p137 = por %p135, %p136
      %s138 = ssub.s32 %s22, %s29
      %p139 = scmp.eq.s32.totalorder %s138, 0
      %s141 = sadd.s32 %s140, 1
      %s142 = scalar_select %p139, %s140, %s141
      %p145 = pneg %p139
      %p146 = scmp.eq.s32.totalorder %s14, 3
      %p147 = por %p145, %p146
      %p148 = scmp.ne.s32.totalorder %s140, %s143
      %p149 = scmp.eq.s32.totalorder %s14, 0
      %p150 = por %p148, %p149
      %p151 = scmp.ne.s32.totalorder %s140, %s143
      %p152 = scmp.eq.s32.totalorder %s19, 3
      %p153 = por %p151, %p152
      %p154 = scmp.ne.s32.totalorder %s143, %s144
      %p155 = scmp.eq.s32.totalorder %s19, 0
      %p156 = por %p154, %p155
      %p157 = scmp.ne.s32.totalorder %s143, %s144
      %p158 = scmp.eq.s32.totalorder %s20, 3
      %p159 = por %p157, %p158
      %p161 = scmp.ne.s32.totalorder %s144, %s160
      %p162 = scmp.eq.s32.totalorder %s20, 0
      %p163 = por %p161, %p162
      %s164 = ssub.s32 %s21, %s33
      %s165 = ssub.s32 %s22, %s29
      %s166 = sor.u32 %s164, %s165
      %p167 = scmp.eq.s32.totalorder %s166, 0
      %s169 = sadd.s32 %s168, 1
      %s170 = scalar_select %p167, %s168, %s169
      %p173 = pneg %p167
      %p174 = scmp.eq.s32.totalorder %s14, 3
      %p175 = por %p173, %p174
      %p176 = scmp.ne.s32.totalorder %s168, %s171
      %p177 = scmp.eq.s32.totalorder %s14, 0
      %p178 = por %p176, %p177
      %p179 = scmp.ne.s32.totalorder %s168, %s171
      %p180 = scmp.eq.s32.totalorder %s19, 3
      %p181 = por %p179, %p180
      %p182 = scmp.ne.s32.totalorder %s171, %s172
      %p183 = scmp.eq.s32.totalorder %s19, 0
      %p184 = por %p182, %p183
      %p185 = scmp.ne.s32.totalorder %s171, %s172
      %p186 = scmp.eq.s32.totalorder %s20, 3
      %p187 = por %p185, %p186
      %p189 = scmp.ne.s32.totalorder %s172, %s188
      %p190 = scmp.eq.s32.totalorder %s20, 0
      %p191 = por %p189, %p190
      %p192 = scmp.le.s32.totalorder 1, %s14
      %p193 = scmp.lt.s32.totalorder %s14, 5
      %p194 = pnand %p192, %p193
      %p195 = pneg %p194
      // Predicated region
      $region9: #{modulated_linear.1} parent=5 // pred_check
        _
      $region10: #{modulated_linear.1} parent=5 // pred_check_branch
        %197 = sbr.rel (%p194) target = $region12
      $region11: #{modulated_linear.1} parent=5 // pred_region
        %s198 = ssub.s32 %s14, 1
        // Predicated region
        $region13: #{modulated_linear.1} parent=11 // pred_check
          %p199 = pneg %p104
        $region14: #{modulated_linear.1} parent=11 // pred_check_branch
          %201 = sbr.rel (%p199) target = $region16
        $region15: #{modulated_linear.1} parent=11 // pred_region
          %p202 = scmp.lt.s32.totalorder %s24, 0
          %s203 = scalar_select %p202, %s24, 0
          %s204 = smul.addr %s203, 8
          %s205 = scalar_lea.vmem %s2, %s204
        $region16: #{modulated_linear.1} parent=11 // pred_fallthru
          _
        // Predicated region
        $region17: #{modulated_linear.1} parent=11 // pred_check
          %p206 = pneg %p130
        $region18: #{modulated_linear.1} parent=11 // pred_check_branch
          %208 = sbr.rel (%p206) target = $region20
        $region19: #{modulated_linear.1} parent=11 // pred_region
          %p209 = scmp.lt.s32.totalorder %s24, 0
          %s210 = scalar_select %p209, %s24, 0
          %s211 = scalar_lea.vmem %s3, %s210
        $region20: #{modulated_linear.1} parent=11 // pred_fallthru
          _
        // Predicated region
        $region21: #{modulated_linear.1} parent=11 // pred_check
          %p212 = pneg %p156
        $region22: #{modulated_linear.1} parent=11 // pred_check_branch
          %214 = sbr.rel (%p212) target = $region24
        $region23: #{modulated_linear.1} parent=11 // pred_region
          %p215 = scmp.lt.s32.totalorder %s24, 0
          %s216 = scalar_select %p215, %s24, 0
          %s217 = smul.addr %s216, 8
          %s218 = scalar_lea.vmem %s4, %s217
        $region24: #{modulated_linear.1} parent=11 // pred_fallthru
          _
      $region12: #{modulated_linear.1} parent=5 // pred_fallthru
        _
      %p219 = scmp.lt.s32.totalorder %s14, 4
      // Predicated region
      $region25: #{modulated_linear.1} parent=5 // pred_check
        %p220 = pneg %p219
      $region26: #{modulated_linear.1} parent=5 // pred_check_branch
        %222 = sbr.rel (%p220) target = $region28
      $region27: #{modulated_linear.1} parent=5 // pred_region
        // Predicated region
        $region29: #{modulated_linear.1} parent=27 // pred_check
          %p223 = pneg %p46
        $region30: #{modulated_linear.1} parent=27 // pred_check_branch
          %225 = sbr.rel (%p223) target = $region32
        $region31: #{modulated_linear.1} parent=27 // pred_region
          %s226 = smul.u32 4, %s21
          %p227 = scmp.lt.s32.totalorder %s226, 15
          %s228 = scalar_select %p227, %s226, 15
          %s229 = smul.addr %s228, 8
          %s230 = scalar_lea.vmem %s0, %s229
          %s231 = smul.u32 4, %s21
        $region32: #{modulated_linear.1} parent=27 // pred_fallthru
          _
        // Predicated region
        $region33: #{modulated_linear.1} parent=27 // pred_check
          %p232 = pneg %p72
        $region34: #{modulated_linear.1} parent=27 // pred_check_branch
          %234 = sbr.rel (%p232) target = $region36
        $region35: #{modulated_linear.1} parent=27 // pred_region
          %s235 = smul.u32 4, %s21
          %p236 = scmp.lt.s32.totalorder %s235, 15
          %s237 = scalar_select %p236, %s235, 15
          %s238 = smul.addr %s237, 8
          %s239 = scalar_lea.vmem %s1, %s238
          %s240 = smul.u32 4, %s21
        $region36: #{modulated_linear.1} parent=27 // pred_fallthru
          _
      $region28: #{modulated_linear.1} parent=5 // pred_fallthru
        _
      %p241 = scmp.le.s32.totalorder 1, %s14
      %p242 = scmp.lt.s32.totalorder %s14, 5
      %p243 = pnand %p241, %p242
      %p244 = pneg %p243
      // Predicated region
      $region37: #{modulated_linear.1} parent=5 // pred_check
        _
      $region38: #{modulated_linear.1} parent=5 // pred_check_branch
        %246 = sbr.rel (%p243) target = $region40
      $region39: #{modulated_linear.1} parent=5 // pred_region
        %s247 = ssub.s32 %s14, 1
        %s248 = smul.u32 4, %s23
        %p249 = scmp.lt.s32.totalorder %s248, 15
        %s250 = scalar_select %p249, %s248, 15
        %s251 = smul.addr %s250, 8
        %s252 = scalar_lea.vmem %s0, %s251
        %p253 = pneg %p52
        %p254 = pneg %p49
        %s255 = smul.u32 4, %s23
        %p256 = scmp.lt.s32.totalorder %s255, 15
        %s257 = scalar_select %p256, %s255, 15
        %s258 = smul.addr %s257, 8
        %s259 = scalar_lea.vmem %s1, %s258
        %p260 = pneg %p78
        %p261 = pneg %p75
        %p262 = scmp.lt.s32.totalorder %s24, 0
        %s263 = scalar_select %p262, %s24, 0
        %s264 = smul.addr %s263, 8
        %s265 = scalar_lea.vmem %s2, %s264
        %p266 = pneg %p104
        %p267 = pneg %p101
        %p268 = scmp.lt.s32.totalorder %s24, 0
        %s269 = scalar_select %p268, %s24, 0
        %s270 = scalar_lea.vmem %s3, %s269
        %p271 = pneg %p130
        %p272 = pneg %p127
        %p273 = scmp.lt.s32.totalorder %s24, 0
        %s274 = scalar_select %p273, %s24, 0
        %s275 = smul.addr %s274, 8
        %s276 = scalar_lea.vmem %s4, %s275
        %p277 = pneg %p156
        %p278 = pneg %p153
        %p279 = pneg %p184
        %p280 = pneg %p181
        %s281 = sand.u32 %s171, 1
        %s282 = scalar_lea.sflag [#allocation3], %s281
        %s283 = sand.u32 %s171, 1
        %s284 = smul.addr %s283, 32
        %s285 = scalar_lea.vmem [#allocation2], %s284
        %s286 = smul.u32 4, %s23
        %p287 = scmp.lt.s32.totalorder %s286, 15
        %s288 = scalar_select %p287, %s286, 15
        %s289 = smul.addr %s288, 8
        %s290 = scalar_lea.vmem %s0, %s289
        %s291 = smul.u32 4, %s23
        %s292 = smul.u32 4, %s23
        %p293 = scmp.lt.s32.totalorder %s292, 15
        %s294 = scalar_select %p293, %s292, 15
        %s295 = smul.addr %s294, 8
        %s296 = scalar_lea.vmem %s1, %s295
        %s297 = smul.u32 4, %s23
        %p298 = scmp.lt.s32.totalorder %s24, 0
        %s299 = scalar_select %p298, %s24, 0
        %s300 = smul.addr %s299, 8
        %s301 = scalar_lea.vmem %s2, %s300
        %p302 = scmp.lt.s32.totalorder %s24, 0
        %s303 = scalar_select %p302, %s24, 0
        %s304 = scalar_lea.vmem %s3, %s303
        %p305 = scmp.lt.s32.totalorder %s24, 0
        %s306 = scalar_select %p305, %s24, 0
        %s307 = smul.addr %s306, 8
        %s308 = scalar_lea.vmem %s4, %s307
        %s309 = smul.u32 4, %s23
        %v310 = vld [vmem:[%s296] sm:$0xff]
        %v311 = vld [vmem:[%s296 + $0x8] sm:$0xff]
        %v312 = vld [vmem:[%s296 + $0x10] sm:$0xff]
        %v313 = vld [vmem:[%s296 + $0x18] sm:$0xff]
        %v314 = vld [vmem:[%s301] sm:$0xff]
        %v315 = vld [vmem:[%s301 + $0x8] sm:$0xff]
        %v316 = vld [vmem:[%s301 + $0x10] sm:$0xff]
        %v317 = vld [vmem:[%s301 + $0x18] sm:$0xff]
        %v318 = vld [vmem:[%s290] sm:$0xff]
        %v319 = vld [vmem:[%s290 + $0x8] sm:$0xff]
        %v320 = vld [vmem:[%s290 + $0x10] sm:$0xff]
        %v321 = vld [vmem:[%s290 + $0x18] sm:$0xff]
        %v322 = vld [vmem:[%s308] sm:$0xff]
        %v323 = vld [vmem:[%s308 + $0x8] sm:$0xff]
        %vm324 = vcmask 130048
        %v326 = vsel %vm324, %v318, 0
        %v329 = vsel %vm324, %v319, 0
        %v332 = vsel %vm324, %v320, 0
        %v335 = vsel %vm324, %v321, 0
        %337 = vmatpush.msra.mxu0 0.0
        %338 = vmatpush.msra.mxu0 0.0
        %339 = vmatpush.msra.mxu0 0.0
        %340 = vmatpush.msra.mxu0 0.0
        %341 = vmatpush.msra.mxu0 0.0
        %342 = vmatpush.msra.mxu0 0.0
        %343 = vmatpush.msra.mxu0 0.0
        %344 = vmatpush.msra.mxu0 0.0
        %345 = vmatpush.msra.mxu0 0.0
        %346 = vmatpush.msra.mxu0 0.0
        %347 = vmatpush.msra.mxu0 0.0
        %348 = vmatpush.msra.mxu0 0.0
        %349 = vmatpush.msra.mxu0 0.0
        %350 = vmatpush.msra.mxu0 0.0
        %351 = vmatpush.msra.mxu0 %v323
        %352 = vmatpush.msra.mxu0 %v322
        %353 = vmatmul.f32.gmra.mxu0 %v326
        %v354 = vpop.f32.mrf.mxu0
        %v355 = vadd.f32 0.0, %v354
        %356 = vmatmul.f32.gmra.mxu0 %v329
        %v357 = vpop.f32.mrf.mxu0
        %v358 = vadd.f32 0.0, %v357
        %359 = vmatmul.f32.gmra.mxu0 %v332
        %v360 = vpop.f32.mrf.mxu0
        %v361 = vadd.f32 0.0, %v360
        %362 = vmatmul.f32.gmra.mxu0 %v335
        %v363 = vpop.f32.mrf.mxu0
        %v364 = vadd.f32 0.0, %v363
        %365 = vdwg.mxu0
        %vm366 = vcmask 261120
        %v368 = vsel %vm366, %v310, 0
        %v371 = vsel %vm366, %v311, 0
        %v374 = vsel %vm366, %v312, 0
        %v377 = vsel %vm366, %v313, 0
        %379 = vmatpush.msra.mxu0 0.0
        %380 = vmatpush.msra.mxu0 0.0
        %381 = vmatpush.msra.mxu0 0.0
        %382 = vmatpush.msra.mxu0 0.0
        %383 = vmatpush.msra.mxu0 0.0
        %384 = vmatpush.msra.mxu0 0.0
        %385 = vmatpush.msra.mxu0 0.0
        %386 = vmatpush.msra.mxu0 0.0
        %387 = vmatpush.msra.mxu0 0.0
        %388 = vmatpush.msra.mxu0 0.0
        %389 = vmatpush.msra.mxu0 0.0
        %390 = vmatpush.msra.mxu0 0.0
        %391 = vmatpush.msra.mxu0 %v317
        %392 = vmatpush.msra.mxu0 %v316
        %393 = vmatpush.msra.mxu0 %v315
        %394 = vmatpush.msra.mxu0 %v314
        %395 = vmatmul.f32.gmra.mxu0 %v368
        %v396 = vpop.f32.mrf.mxu0
        %v397 = vadd.f32 %v355, %v396
        %398 = vmatmul.f32.gmra.mxu0 %v371
        %v399 = vpop.f32.mrf.mxu0
        %v400 = vadd.f32 %v358, %v399
        %401 = vmatmul.f32.gmra.mxu0 %v374
        %v402 = vpop.f32.mrf.mxu0
        %v403 = vadd.f32 %v361, %v402
        %404 = vmatmul.f32.gmra.mxu0 %v377
        %v405 = vpop.f32.mrf.mxu0
        %v406 = vadd.f32 %v364, %v405
        %407 = vdwg.mxu0
        %v408 = vld [vmem:[%s304] sm:$0x1]
        %v410 = vperm.slane %v408, 0
        %v412 = vadd.f32 %v397, %v410
        %v413 = vadd.f32 %v400, %v410
        %v414 = vadd.f32 %v403, %v410
        %v415 = vadd.f32 %v406, %v410
        %416 = vst [vmem:[%s285] sm:$0xff] %v412
        %417 = vst [vmem:[%s285 + $0x8] sm:$0xff] %v413
        %418 = vst [vmem:[%s285 + $0x10] sm:$0xff] %v414
        %419 = vst [vmem:[%s285 + $0x18] sm:$0xff] %v415
        %s420 = sand.u32 %s171, 1
        %s421 = scalar_lea.sflag [#allocation3], %s420
        %s422 = sand.u32 %s171, 1
        %s423 = smul.addr %s422, 32
        %s424 = scalar_lea.vmem [#allocation2], %s423
        // Predicated region
        $region41: #{modulated_linear.1} parent=39 // pred_check
          %p425 = pneg %p181
        $region42: #{modulated_linear.1} parent=39 // pred_check_branch
          %427 = sbr.rel (%p425) target = $region44
        $region43: #{modulated_linear.1} parent=39 // pred_region
          %s428 = smul.u32 4, %s23
          %430 = vsyncadd %s421, 0
          %s431 = sadd.s32 %s24, %s428
          %s432 = smul.addr %s431, 8
          %s433 = scalar_lea.hbm %s5, %s432
          %s434 = sshll.u32 %s424, 4
          %s435 = int_to_ptr.vmem [resolvable:$true] %s434
          %s436 = sshll.u32 %s433, 4
          %s437 = int_to_ptr.hbm [resolvable:$true] %s436
          %442 = dma.vmem_to_hbm [thread:$0]  %s435, 512, %s437, %s421, 128, 128, 8
        $region44: #{modulated_linear.1} parent=39 // pred_fallthru
          _
      $region40: #{modulated_linear.1} parent=5 // pred_fallthru
        _
      %p443 = scmp.le.s32.totalorder 2, %s14
      // Predicated region
      $region45: #{modulated_linear.1} parent=5 // pred_check
        %p444 = pneg %p443
      $region46: #{modulated_linear.1} parent=5 // pred_check_branch
        %446 = sbr.rel (%p444) target = $region48
      $region47: #{modulated_linear.1} parent=5 // pred_region
        %s447 = ssub.s32 %s14, 2
        // Predicated region
        $region49: #{modulated_linear.1} parent=47 // pred_check
          %p448 = pneg %p187
        $region50: #{modulated_linear.1} parent=47 // pred_check_branch
          %450 = sbr.rel (%p448) target = $region52
        $region51: #{modulated_linear.1} parent=47 // pred_region
          %s451 = sand.u32 %s172, 1
          %s452 = scalar_lea.sflag [#allocation3], %s451
          %s453 = sand.u32 %s172, 1
          %s454 = smul.addr %s453, 32
          %s455 = scalar_lea.vmem [#allocation2], %s454
          %457 = dma.done %s452, 512
        $region52: #{modulated_linear.1} parent=47 // pred_fallthru
          _
      $region48: #{modulated_linear.1} parent=5 // pred_fallthru
        _
    $region6: #{modulated_linear.1} parent=1 // loop_footer
      %s18 = sadd.s32 1, %s14
    $region7: #{modulated_linear.1} parent=1 // loop_footer_branch
      %13 = sbr.rel target = $region3
    $region8: #{modulated_linear.1} parent=1 // loop_exit
      _
    %458 = vsyncpa [#allocation3], 1
    %s459 = scalar_lea.sflag [#allocation3], 1
    %460 = vsyncpa %s459, 1

</llo_original>
